<compile_context>
chip_gen: v6e
topology: v6e:2x2x1
jax: 0.10.0
libtpu: 0.0.40
codegen_flags: <defaults>
</compile_context>

<pallas_src>
import functools

import jax
import jax.numpy as jnp
from jax import lax
from jax.experimental import pallas as pl
from jax.experimental.pallas import tpu as pltpu


def example_code_kernel(x_ref, p0_hbm, p1_hbm, w1t_hbm, m2_hbm,
                        b1_ref, b2_ref, buf_ref, o_ref,
                        p0_v, p1_v, w1t_v, m2_v, sem):
    # Kick off all weight DMAs immediately (HBM -> VMEM scratch). Each copy is
    # waited on only right before its matmul, so earlier matmuls overlap the
    # remaining parameter traffic.
    cp_p0 = pltpu.make_async_copy(p0_hbm, p0_v, sem.at[0])
    cp_p1 = pltpu.make_async_copy(p1_hbm, p1_v, sem.at[1])
    cp_w1 = pltpu.make_async_copy(w1t_hbm, w1t_v, sem.at[2])
    cp_m2 = pltpu.make_async_copy(m2_hbm, m2_v, sem.at[3])
    cp_p0.start()
    cp_p1.start()
    cp_w1.start()
    cp_m2.start()

    x = x_ref[...]

    # h = relu(x @ P0)
    cp_p0.wait()
    h = jnp.dot(x, p0_v[...], preferred_element_type=jnp.float32)
    h = jnp.maximum(h, 0.0)

    # h = h @ P1 + buffer[:B]   (buffer tile matches this batch tile)
    cp_p1.wait()
    h = jnp.dot(h, p1_v[...], preferred_element_type=jnp.float32) + buf_ref[...]

    # lin1: h @ W1^T + b1  (W1^T passed pre-transposed as (in, out)); relu
    cp_w1.wait()
    h = jnp.dot(h, w1t_v[...], preferred_element_type=jnp.float32) + b1_ref[...]
    h = jnp.maximum(h, 0.0)

    # (h @ P2) @ W2^T + b2 == h @ M2 + b2 with M2 = P2 @ W2^T precomputed.
    cp_m2.wait()
    h = jnp.dot(h, m2_v[...], preferred_element_type=jnp.float32) + b2_ref[...]
    o_ref[...] = jnp.maximum(h, 0.0)


@functools.lru_cache(maxsize=None)
def _build_forward(B, D, tile_b):
    batched = lambda i: (i, 0)       # batch-tiled operands
    const = lambda i: (0, 0)         # biases: same (whole) block every step
    hbm = pl.BlockSpec(memory_space=pl.ANY)   # weights: raw refs, manual DMA

    n_steps = B // tile_b
    # Advisory cost hint for XLA's scheduler: 4 MXU matmuls over the batch,
    # plus parameter / activation bytes.
    flops = 4 * 2 * B * D * D
    bytes_accessed = 4 * (4 * D * D + 2 * D + 3 * B * D)

    return pl.pallas_call(
        example_code_kernel,
        out_shape=jax.ShapeDtypeStruct((B, D), jnp.float32),
        grid_spec=pltpu.PrefetchScalarGridSpec(
            num_scalar_prefetch=0,
            grid=(n_steps,),
            in_specs=[
                pl.BlockSpec((tile_b, D), batched),   # x
                hbm,                                  # mm_param0
                hbm,                                  # mm_param1
                hbm,                                  # lin1.weight^T (in, out)
                hbm,                                  # M2 = mm_param2 @ lin2.weight^T
                pl.BlockSpec((1, D), const),          # lin1.bias
                pl.BlockSpec((1, D), const),          # lin2.bias
                pl.BlockSpec((tile_b, D), batched),   # buffer (rows [0, B) only)
            ],
            out_specs=pl.BlockSpec((tile_b, D), batched),
            scratch_shapes=[
                pltpu.VMEM((D, D), jnp.float32),      # P0
                pltpu.VMEM((D, D), jnp.float32),      # P1
                pltpu.VMEM((D, D), jnp.float32),      # W1^T
                pltpu.VMEM((D, D), jnp.float32),      # M2
                pltpu.SemaphoreType.DMA((4,)),
            ],
        ),
        compiler_params=pltpu.CompilerParams(
            dimension_semantics=("parallel",),
            vmem_limit_bytes=32 * 1024 * 1024,
        ),
        cost_estimate=pl.CostEstimate(
            flops=flops, transcendentals=0, bytes_accessed=bytes_accessed),
    )


def example_code_forward(x, p0, p1, p2, w1, b1, w2, b2, buffer, *, tile_b=None):
    B, D = x.shape

    if tile_b is None:
        # Single grid step: weights are DMA'd exactly once and overlapped with
        # the matmul chain. v5e/v6e have one TensorCore, so a batch split would
        # only add per-step overhead and duplicate parameter DMA.
        tile_b = B
    assert B % tile_b == 0
    assert tile_b == B or tile_b % 8 == 0

    # Wrapper-side, one-time parameter prep (constant-foldable under jit):
    #   * lin1 weight as (in, out) so the kernel contracts the lane dim with a
    #     plain MXU matmul (no per-step in-kernel transpose).
    #   * P2 fused with lin2: (h @ P2) @ W2^T == h @ (P2 @ W2^T) exactly up to
    #     f32 reassociation (no nonlinearity in between).
    w1t = jnp.transpose(w1)
    m2 = jnp.dot(p2, jnp.transpose(w2), precision=lax.Precision.HIGHEST)
    b1_2d = b1.reshape(1, D)
    b2_2d = b2.reshape(1, D)

    fwd = _build_forward(B, D, tile_b)
    return fwd(x, p0, p1, w1t, m2, b1_2d, b2_2d, buffer)


def reference_forward(x, p0, p1, p2, w1, b1, w2, b2, buffer):
    # Unfused reference that mirrors the original PyTorch module exactly.
    h = jnp.maximum(x @ p0, 0.0)
    h = h @ p1 + buffer[: x.shape[0]]
    h = h @ w1.T + b1
    h = jnp.maximum(h, 0.0)
    h = h @ p2
    h = h @ w2.T + b2
    return jnp.maximum(h, 0.0)


if __name__ == "__main__":
    # Small shapes consistent with the module (original: batch=256, d_hid=512).
    batch_size = 64
    d_hid = 256

    key = jax.random.PRNGKey(0)
    keys = jax.random.split(key, 9)

    # Deterministic synthetic parameter init (shapes from __init__).
    p0 = jax.random.normal(keys[0], (d_hid, d_hid), jnp.float32)
    p1 = jax.random.normal(keys[1], (d_hid, d_hid), jnp.float32)
    p2 = jax.random.normal(keys[2], (d_hid, d_hid), jnp.float32)
    w1 = jax.random.normal(keys[3], (d_hid, d_hid), jnp.float32) * 0.05
    b1 = jax.random.normal(keys[4], (d_hid,), jnp.float32) * 0.05
    w2 = jax.random.normal(keys[5], (d_hid, d_hid), jnp.float32) * 0.05
    b2 = jax.random.normal(keys[6], (d_hid,), jnp.float32) * 0.05
    buffer = jax.random.normal(keys[7], (batch_size + 100, d_hid), jnp.float32)

    x = jax.random.normal(keys[8], (batch_size, d_hid), jnp.float32)

    out = example_code_forward(x, p0, p1, p2, w1, b1, w2, b2, buffer)
    out = jax.block_until_ready(out)

    ref = reference_forward(x, p0, p1, p2, w1, b1, w2, b2, buffer)
    ref = jax.block_until_ready(ref)

    assert out.shape == (batch_size, d_hid)
    assert jnp.allclose(out, ref, rtol=1e-4, atol=1e-3), "mismatch vs reference"

    print("KERNEL_OK")
</pallas_src>

<mosaic_0001>
module attributes {stable_mosaic.version = 11 : i64} {
  func.func @example_code_kernel(%arg0: i32, %arg1: memref<64x256xf32, #tpu.memory_space<vmem>>, %arg2: memref<256x256xf32, #tpu.memory_space<any>>, %arg3: memref<256x256xf32, #tpu.memory_space<any>>, %arg4: memref<256x256xf32, #tpu.memory_space<any>>, %arg5: memref<256x256xf32, #tpu.memory_space<any>>, %arg6: memref<1x256xf32, #tpu.memory_space<vmem>>, %arg7: memref<1x256xf32, #tpu.memory_space<vmem>>, %arg8: memref<64x256xf32, #tpu.memory_space<vmem>>, %arg9: memref<64x256xf32, #tpu.memory_space<vmem>>, %arg10: memref<256x256xf32, #tpu.memory_space<vmem>>, %arg11: memref<256x256xf32, #tpu.memory_space<vmem>>, %arg12: memref<256x256xf32, #tpu.memory_space<vmem>>, %arg13: memref<256x256xf32, #tpu.memory_space<vmem>>, %arg14: memref<4x!tpu.dma_semaphore, #tpu.memory_space<semaphore_mem>>) attributes {dimension_semantics = [#tpu.dimension_semantics<parallel>], iteration_bounds = array<i64: 1>, scalar_prefetch = 0 : i64, scratch_operands = 5 : i64, tpu.core_type = #tpu.core_type<tc>, window_params = [{transform_indices = @transform_0, window_bounds = array<i64: 64, 256>}, {}, {}, {}, {}, {pipeline_mode = #tpu.pipeline_mode<synchronous>, transform_indices = @transform_5, window_bounds = array<i64: 1, 256>}, {pipeline_mode = #tpu.pipeline_mode<synchronous>, transform_indices = @transform_6, window_bounds = array<i64: 1, 256>}, {transform_indices = @transform_7, window_bounds = array<i64: 64, 256>}, {transform_indices = @transform_8, window_bounds = array<i64: 64, 256>}]} {
    %c0_i32 = arith.constant 0 : i32
    %0 = tpu.memref_slice %arg14[%c0_i32] : memref<4x!tpu.dma_semaphore, #tpu.memory_space<semaphore_mem>> -> memref<1x!tpu.dma_semaphore, #tpu.memory_space<semaphore_mem>>
    %1 = tpu.memref_squeeze %0 : memref<1x!tpu.dma_semaphore, #tpu.memory_space<semaphore_mem>> -> memref<!tpu.dma_semaphore, #tpu.memory_space<semaphore_mem>>
    tpu.enqueue_dma source(%arg2 : memref<256x256xf32, #tpu.memory_space<any>>) target(%arg10 : memref<256x256xf32, #tpu.memory_space<vmem>>) target_semaphore(%1 : memref<!tpu.dma_semaphore, #tpu.memory_space<semaphore_mem>>)
    %c1_i32 = arith.constant 1 : i32
    %2 = tpu.memref_slice %arg14[%c1_i32] : memref<4x!tpu.dma_semaphore, #tpu.memory_space<semaphore_mem>> -> memref<1x!tpu.dma_semaphore, #tpu.memory_space<semaphore_mem>>
    %3 = tpu.memref_squeeze %2 : memref<1x!tpu.dma_semaphore, #tpu.memory_space<semaphore_mem>> -> memref<!tpu.dma_semaphore, #tpu.memory_space<semaphore_mem>>
    tpu.enqueue_dma source(%arg3 : memref<256x256xf32, #tpu.memory_space<any>>) target(%arg11 : memref<256x256xf32, #tpu.memory_space<vmem>>) target_semaphore(%3 : memref<!tpu.dma_semaphore, #tpu.memory_space<semaphore_mem>>)
    %c2_i32 = arith.constant 2 : i32
    %4 = tpu.memref_slice %arg14[%c2_i32] : memref<4x!tpu.dma_semaphore, #tpu.memory_space<semaphore_mem>> -> memref<1x!tpu.dma_semaphore, #tpu.memory_space<semaphore_mem>>
    %5 = tpu.memref_squeeze %4 : memref<1x!tpu.dma_semaphore, #tpu.memory_space<semaphore_mem>> -> memref<!tpu.dma_semaphore, #tpu.memory_space<semaphore_mem>>
    tpu.enqueue_dma source(%arg4 : memref<256x256xf32, #tpu.memory_space<any>>) target(%arg12 : memref<256x256xf32, #tpu.memory_space<vmem>>) target_semaphore(%5 : memref<!tpu.dma_semaphore, #tpu.memory_space<semaphore_mem>>)
    %c3_i32 = arith.constant 3 : i32
    %6 = tpu.memref_slice %arg14[%c3_i32] : memref<4x!tpu.dma_semaphore, #tpu.memory_space<semaphore_mem>> -> memref<1x!tpu.dma_semaphore, #tpu.memory_space<semaphore_mem>>
    %7 = tpu.memref_squeeze %6 : memref<1x!tpu.dma_semaphore, #tpu.memory_space<semaphore_mem>> -> memref<!tpu.dma_semaphore, #tpu.memory_space<semaphore_mem>>
    tpu.enqueue_dma source(%arg5 : memref<256x256xf32, #tpu.memory_space<any>>) target(%arg13 : memref<256x256xf32, #tpu.memory_space<vmem>>) target_semaphore(%7 : memref<!tpu.dma_semaphore, #tpu.memory_space<semaphore_mem>>)
    %c0 = arith.constant 0 : index
    %c0_0 = arith.constant 0 : index
    %8 = vector.load %arg1[%c0, %c0_0] : memref<64x256xf32, #tpu.memory_space<vmem>>, vector<64x256xf32>
    %c0_i32_1 = arith.constant 0 : i32
    %9 = tpu.memref_slice %arg14[%c0_i32_1] : memref<4x!tpu.dma_semaphore, #tpu.memory_space<semaphore_mem>> -> memref<1x!tpu.dma_semaphore, #tpu.memory_space<semaphore_mem>>
    %10 = tpu.memref_squeeze %9 : memref<1x!tpu.dma_semaphore, #tpu.memory_space<semaphore_mem>> -> memref<!tpu.dma_semaphore, #tpu.memory_space<semaphore_mem>>
    tpu.wait_dma2 semaphore(%10 : memref<!tpu.dma_semaphore, #tpu.memory_space<semaphore_mem>>) src(%arg2 : memref<256x256xf32, #tpu.memory_space<any>>) dst(%arg10 : memref<256x256xf32, #tpu.memory_space<vmem>>)
    %c0_2 = arith.constant 0 : index
    %c0_3 = arith.constant 0 : index
    %11 = vector.load %arg10[%c0_2, %c0_3] : memref<256x256xf32, #tpu.memory_space<vmem>>, vector<256x256xf32>
    %cst = arith.constant dense<0.000000e+00> : vector<64x256xf32>
    %12 = tpu.matmul %8, %11, %cst {dimension_numbers = #tpu.dot_dimension_numbers<[1], [0], [0], [1], [0, 0, 1, 1], [], []>} : vector<64x256xf32>, vector<256x256xf32>, vector<64x256xf32> -> vector<64x256xf32>
    %cst_4 = arith.constant 0.000000e+00 : f32
    %13 = vector.broadcast %cst_4 : f32 to vector<64x256xf32>
    %14 = arith.maximumf %12, %13 : vector<64x256xf32>
    %c1_i32_5 = arith.constant 1 : i32
    %15 = tpu.memref_slice %arg14[%c1_i32_5] : memref<4x!tpu.dma_semaphore, #tpu.memory_space<semaphore_mem>> -> memref<1x!tpu.dma_semaphore, #tpu.memory_space<semaphore_mem>>
    %16 = tpu.memref_squeeze %15 : memref<1x!tpu.dma_semaphore, #tpu.memory_space<semaphore_mem>> -> memref<!tpu.dma_semaphore, #tpu.memory_space<semaphore_mem>>
    tpu.wait_dma2 semaphore(%16 : memref<!tpu.dma_semaphore, #tpu.memory_space<semaphore_mem>>) src(%arg3 : memref<256x256xf32, #tpu.memory_space<any>>) dst(%arg11 : memref<256x256xf32, #tpu.memory_space<vmem>>)
    %c0_6 = arith.constant 0 : index
    %c0_7 = arith.constant 0 : index
    %17 = vector.load %arg11[%c0_6, %c0_7] : memref<256x256xf32, #tpu.memory_space<vmem>>, vector<256x256xf32>
    %cst_8 = arith.constant dense<0.000000e+00> : vector<64x256xf32>
    %18 = tpu.matmul %14, %17, %cst_8 {dimension_numbers = #tpu.dot_dimension_numbers<[1], [0], [0], [1], [0, 0, 1, 1], [], []>} : vector<64x256xf32>, vector<256x256xf32>, vector<64x256xf32> -> vector<64x256xf32>
    %c0_9 = arith.constant 0 : index
    %c0_10 = arith.constant 0 : index
    %19 = vector.load %arg8[%c0_9, %c0_10] : memref<64x256xf32, #tpu.memory_space<vmem>>, vector<64x256xf32>
    %20 = arith.addf %18, %19 : vector<64x256xf32>
    %c2_i32_11 = arith.constant 2 : i32
    %21 = tpu.memref_slice %arg14[%c2_i32_11] : memref<4x!tpu.dma_semaphore, #tpu.memory_space<semaphore_mem>> -> memref<1x!tpu.dma_semaphore, #tpu.memory_space<semaphore_mem>>
    %22 = tpu.memref_squeeze %21 : memref<1x!tpu.dma_semaphore, #tpu.memory_space<semaphore_mem>> -> memref<!tpu.dma_semaphore, #tpu.memory_space<semaphore_mem>>
    tpu.wait_dma2 semaphore(%22 : memref<!tpu.dma_semaphore, #tpu.memory_space<semaphore_mem>>) src(%arg4 : memref<256x256xf32, #tpu.memory_space<any>>) dst(%arg12 : memref<256x256xf32, #tpu.memory_space<vmem>>)
    %c0_12 = arith.constant 0 : index
    %c0_13 = arith.constant 0 : index
    %23 = vector.load %arg12[%c0_12, %c0_13] : memref<256x256xf32, #tpu.memory_space<vmem>>, vector<256x256xf32>
    %cst_14 = arith.constant dense<0.000000e+00> : vector<64x256xf32>
    %24 = tpu.matmul %20, %23, %cst_14 {dimension_numbers = #tpu.dot_dimension_numbers<[1], [0], [0], [1], [0, 0, 1, 1], [], []>} : vector<64x256xf32>, vector<256x256xf32>, vector<64x256xf32> -> vector<64x256xf32>
    %c0_15 = arith.constant 0 : index
    %c0_16 = arith.constant 0 : index
    %25 = vector.load %arg6[%c0_15, %c0_16] : memref<1x256xf32, #tpu.memory_space<vmem>>, vector<1x256xf32>
    %26 = vector.broadcast %25 : vector<1x256xf32> to vector<64x256xf32>
    %27 = arith.addf %24, %26 : vector<64x256xf32>
    %cst_17 = arith.constant 0.000000e+00 : f32
    %28 = vector.broadcast %cst_17 : f32 to vector<64x256xf32>
    %29 = arith.maximumf %27, %28 : vector<64x256xf32>
    %c3_i32_18 = arith.constant 3 : i32
    %30 = tpu.memref_slice %arg14[%c3_i32_18] : memref<4x!tpu.dma_semaphore, #tpu.memory_space<semaphore_mem>> -> memref<1x!tpu.dma_semaphore, #tpu.memory_space<semaphore_mem>>
    %31 = tpu.memref_squeeze %30 : memref<1x!tpu.dma_semaphore, #tpu.memory_space<semaphore_mem>> -> memref<!tpu.dma_semaphore, #tpu.memory_space<semaphore_mem>>
    tpu.wait_dma2 semaphore(%31 : memref<!tpu.dma_semaphore, #tpu.memory_space<semaphore_mem>>) src(%arg5 : memref<256x256xf32, #tpu.memory_space<any>>) dst(%arg13 : memref<256x256xf32, #tpu.memory_space<vmem>>)
    %c0_19 = arith.constant 0 : index
    %c0_20 = arith.constant 0 : index
    %32 = vector.load %arg13[%c0_19, %c0_20] : memref<256x256xf32, #tpu.memory_space<vmem>>, vector<256x256xf32>
    %cst_21 = arith.constant dense<0.000000e+00> : vector<64x256xf32>
    %33 = tpu.matmul %29, %32, %cst_21 {dimension_numbers = #tpu.dot_dimension_numbers<[1], [0], [0], [1], [0, 0, 1, 1], [], []>} : vector<64x256xf32>, vector<256x256xf32>, vector<64x256xf32> -> vector<64x256xf32>
    %c0_22 = arith.constant 0 : index
    %c0_23 = arith.constant 0 : index
    %34 = vector.load %arg7[%c0_22, %c0_23] : memref<1x256xf32, #tpu.memory_space<vmem>>, vector<1x256xf32>
    %35 = vector.broadcast %34 : vector<1x256xf32> to vector<64x256xf32>
    %36 = arith.addf %33, %35 : vector<64x256xf32>
    %cst_24 = arith.constant 0.000000e+00 : f32
    %37 = vector.broadcast %cst_24 : f32 to vector<64x256xf32>
    %38 = arith.maximumf %36, %37 : vector<64x256xf32>
    %c0_25 = arith.constant 0 : index
    %c0_26 = arith.constant 0 : index
    %39 = vector.load %arg9[%c0_25, %c0_26] : memref<64x256xf32, #tpu.memory_space<vmem>>, vector<64x256xf32>
    tpu.vector_store %arg9[%c0_25, %c0_26], %38 {strides = array<i32>} : memref<64x256xf32, #tpu.memory_space<vmem>>, vector<64x256xf32>,
    return
  }
  func.func @transform_0(%arg0: i32) -> (i32, i32) {
    %c0_i32 = arith.constant 0 : i32
    %c0_i32_0 = arith.constant 0 : i32
    return %arg0, %c0_i32 : i32, i32
  }
  func.func @transform_5(%arg0: i32) -> (i32, i32) {
    %c0_i32 = arith.constant 0 : i32
    %c0_i32_0 = arith.constant 0 : i32
    %c0_i32_1 = arith.constant 0 : i32
    return %c0_i32, %c0_i32_0 : i32, i32
  }
  func.func @transform_6(%arg0: i32) -> (i32, i32) {
    %c0_i32 = arith.constant 0 : i32
    %c0_i32_0 = arith.constant 0 : i32
    %c0_i32_1 = arith.constant 0 : i32
    return %c0_i32, %c0_i32_0 : i32, i32
  }
  func.func @transform_7(%arg0: i32) -> (i32, i32) {
    %c0_i32 = arith.constant 0 : i32
    %c0_i32_0 = arith.constant 0 : i32
    return %arg0, %c0_i32 : i32, i32
  }
  func.func @transform_8(%arg0: i32) -> (i32, i32) {
    %c0_i32 = arith.constant 0 : i32
    %c0_i32_0 = arith.constant 0 : i32
    return %arg0, %c0_i32 : i32, i32
  }
}

</mosaic_0001>

<llo_original>
// kernel: tpu_custom_call.1
$region0: #{tpu_custom_call.1}
  #allocation0 [shape = 'u32[]', space=smem, size = 0x4, offset = 0x4, fixed_abs, tag = 'smem constant byte address 0x4 - core index']
  #allocation1 [shape = 'u32[144,128]{1,0:T(1,128)}', space=vmem, size = 0x12000, scoped, tag = 'internal scratch']
  #allocation2 [shape = 'f32[256,256]{1,0:T(8,128)}', space=vmem, size = 0x40000, scoped, tag = 'scratch operand']
  #allocation3 [shape = 'f32[256,256]{1,0:T(8,128)}', space=vmem, size = 0x40000, scoped, tag = 'scratch operand']
  #allocation4 [shape = 'f32[256,256]{1,0:T(8,128)}', space=vmem, size = 0x40000, scoped, tag = 'scratch operand']
  #allocation5 [shape = 'f32[256,256]{1,0:T(8,128)}', space=vmem, size = 0x40000, scoped, tag = 'scratch operand']
  #allocation6 [shape = 's32[4]{0}', space=sflag, size = 0x10, scoped, tag = 'scratch operand']
  #allocation13 [shape = 's32[]', space=sflag, size = 0x4, offset = 0, fixed_abs, tag = 'sflag constant byte address 0x0 - dummy sync flag']
  #allocation14 [shape = 's32[]', space=sflag, size = 0x4, offset = 0, fixed_abs, tag = 'sflag constant byte address 0x0 - dummy sync flag']
  #allocation15 [shape = 'u32[]', space=smem, size = 0x4, offset = 0x44, fixed_abs, tag = 'smem constant byte address 0x44 - assertion arg 0']
  #allocation16 [shape = 'u32[]', space=smem, size = 0x4, offset = 0x48, fixed_abs, tag = 'smem constant byte address 0x48 - assertion arg 1']
  #allocation17 [shape = 's32[]', space=sflag, size = 0x4, offset = 0, fixed_abs, tag = 'sflag constant byte address 0x0 - dummy sync flag']
  #allocation18 [shape = 's32[]', space=sflag, size = 0x4, offset = 0, fixed_abs, tag = 'sflag constant byte address 0x0 - dummy sync flag']
  #allocation19 [shape = 's32[]', space=sflag, size = 0x4, offset = 0, fixed_abs, tag = 'sflag constant byte address 0x0 - dummy sync flag']
  #allocation20 [shape = 's32[]', space=sflag, size = 0x4, offset = 0, fixed_abs, tag = 'sflag constant byte address 0x0 - dummy sync flag']
  #allocation21 [shape = 's32[]', space=sflag, size = 0x4, offset = 0, fixed_abs, tag = 'sflag constant byte address 0x0 - dummy sync flag']
  #allocation22 [shape = 's32[]', space=sflag, size = 0x4, offset = 0, fixed_abs, tag = 'sflag constant byte address 0x0 - dummy sync flag']
  %s0 = inlined_call_operand.hbm [shape: f32[64,256], index: 0, kind: input, shape index: {}]
  %s1 = inlined_call_operand.hbm [shape: f32[256,256], index: 1, kind: input, shape index: {}]
  %s2 = inlined_call_operand.hbm [shape: f32[256,256], index: 2, kind: input, shape index: {}]
  %s3 = inlined_call_operand.hbm [shape: f32[256,256], index: 3, kind: input, shape index: {}]
  %s4 = inlined_call_operand.hbm [shape: f32[256,256], index: 4, kind: input, shape index: {}]
  %s5 = inlined_call_operand.vmem [shape: f32[1,256], index: 5, kind: input, shape index: {}]
  %s6 = inlined_call_operand.vmem [shape: f32[1,256], index: 6, kind: input, shape index: {}]
  %s7 = inlined_call_operand.hbm [shape: f32[164,256], index: 7, kind: input, shape index: {}]
  %s8 = inlined_call_operand.hbm [shape: f32[64,256], index: 8, kind: output, shape index: {}]
  %s9 = sld [smem:[#allocation0]]
  $region50: #{tpu_custom_call.1} parent=0
    _
  %s11 = ssub.s32 1, %s9
  %s12 = scalar_select 0, %s11, %s9
  $region1: #{tpu_custom_call.1} parent=0
    #allocation7 [shape = 'u8[65536]{0}', space=vmem, size = 0x10000, scoped, tag = 'input window, operand 0, single buffered']
    #allocation8 [shape = 's32[1]{0}', space=sflag, size = 0x4, scoped, tag = 'scoped memory for tpu_custom_call.1']
    #allocation9 [shape = 's32[1]{0}', space=sflag, size = 0x4, scoped, tag = 'scoped memory for tpu_custom_call.1']
    #allocation10 [shape = 'u8[65536]{0}', space=vmem, size = 0x10000, scoped, tag = 'input window, operand 7, single buffered']
    #allocation11 [shape = 's32[1]{0}', space=sflag, size = 0x4, scoped, tag = 'scoped memory for tpu_custom_call.1']
    #allocation12 [shape = 'u8[65536]{0}', space=vmem, size = 0x10000, scoped, tag = 'output window, operand 0, single buffered']
    %13 = vsyncpa [#allocation8], 0
    %14 = vsyncpa [#allocation11], 0
    %15 = vsyncpa [#allocation9], 0
    // Predicated region
    $region2: #{tpu_custom_call.1} parent=1 // pred_check
      _
    $region3: #{tpu_custom_call.1} parent=1 // pred_check_branch
      %17 = sbr.rel (0) target = $region5
    $region4: #{tpu_custom_call.1} parent=1 // pred_region
      %s19 = ssub.s32 2048, 2048
      %20 = vsyncadd [#allocation8], %s19
      %s21 = sshll.u32 [#allocation7], 4
      %s22 = int_to_ptr.vmem [resolvable:$true] %s21
      %27 = dma.hbm_to_vmem [thread:$0]  %s0, 2048, %s22, [#allocation8], 256, 256, 16
    $region5: #{tpu_custom_call.1} parent=1 // pred_fallthru
      _
    // Predicated region
    $region6: #{tpu_custom_call.1} parent=1 // pred_check
      _
    $region7: #{tpu_custom_call.1} parent=1 // pred_check_branch
      %29 = sbr.rel (0) target = $region9
    $region8: #{tpu_custom_call.1} parent=1 // pred_region
      _
    $region9: #{tpu_custom_call.1} parent=1 // pred_fallthru
      _
    // Predicated region
    $region10: #{tpu_custom_call.1} parent=1 // pred_check
      _
    $region11: #{tpu_custom_call.1} parent=1 // pred_check_branch
      %31 = sbr.rel (0) target = $region13
    $region12: #{tpu_custom_call.1} parent=1 // pred_region
      _
    $region13: #{tpu_custom_call.1} parent=1 // pred_fallthru
      _
    // Predicated region
    $region14: #{tpu_custom_call.1} parent=1 // pred_check
      _
    $region15: #{tpu_custom_call.1} parent=1 // pred_check_branch
      %33 = sbr.rel (0) target = $region17
    $region16: #{tpu_custom_call.1} parent=1 // pred_region
      %s35 = ssub.s32 2048, 2048
      %36 = vsyncadd [#allocation11], %s35
      %s37 = sshll.u32 [#allocation10], 4
      %s38 = int_to_ptr.vmem [resolvable:$true] %s37
      %43 = dma.hbm_to_vmem [thread:$0]  %s7, 2048, %s38, [#allocation11], 256, 256, 16
    $region17: #{tpu_custom_call.1} parent=1 // pred_fallthru
      _
    // Predicated region
    $region18: #{tpu_custom_call.1} parent=1 // pred_check
      _
    $region19: #{tpu_custom_call.1} parent=1 // pred_check_branch
      %45 = sbr.rel (0) target = $region21
    $region20: #{tpu_custom_call.1} parent=1 // pred_region
      %46 = dma.done [#allocation8], 2048
    $region21: #{tpu_custom_call.1} parent=1 // pred_fallthru
      _
    // Predicated region
    $region22: #{tpu_custom_call.1} parent=1 // pred_check
      _
    $region23: #{tpu_custom_call.1} parent=1 // pred_check_branch
      %48 = sbr.rel (0) target = $region25
    $region24: #{tpu_custom_call.1} parent=1 // pred_region
      %49 = dma.done [#allocation11], 2048
    $region25: #{tpu_custom_call.1} parent=1 // pred_fallthru
      _
    // Predicated region
    $region26: #{tpu_custom_call.1} parent=1 // pred_check
      _
    $region27: #{tpu_custom_call.1} parent=1 // pred_check_branch
      %51 = sbr.rel target = $region29
    $region28: #{tpu_custom_call.1} parent=1 // pred_region
      %52 = sst [smem:[#allocation15]] [#allocation14]
      %53 = sst [smem:[#allocation16]] [#allocation13]
    $region29: #{tpu_custom_call.1} parent=1 // pred_fallthru
      _
    %55 = shalt.err (0)
    %s57 = sshll.u32 [#allocation2], 4
    %s58 = int_to_ptr.vmem [resolvable:$true] %s57
    %60 = dma.hbm_to_vmem [thread:$0]  %s1, 8192, %s58, [#allocation6]
    %s61 = scalar_lea.sflag [#allocation6], 1
    // Predicated region
    $region30: #{tpu_custom_call.1} parent=1 // pred_check
      _
    $region31: #{tpu_custom_call.1} parent=1 // pred_check_branch
      %63 = sbr.rel target = $region33
    $region32: #{tpu_custom_call.1} parent=1 // pred_region
      %64 = sst [smem:[#allocation15]] [#allocation18]
      %65 = sst [smem:[#allocation16]] [#allocation17]
    $region33: #{tpu_custom_call.1} parent=1 // pred_fallthru
      _
    %67 = shalt.err (0)
    %s69 = sshll.u32 [#allocation3], 4
    %s70 = int_to_ptr.vmem [resolvable:$true] %s69
    %72 = dma.hbm_to_vmem [thread:$0]  %s2, 8192, %s70, %s61
    %s73 = scalar_lea.sflag [#allocation6], 2
    // Predicated region
    $region34: #{tpu_custom_call.1} parent=1 // pred_check
      _
    $region35: #{tpu_custom_call.1} parent=1 // pred_check_branch
      %75 = sbr.rel target = $region37
    $region36: #{tpu_custom_call.1} parent=1 // pred_region
      %76 = sst [smem:[#allocation15]] [#allocation20]
      %77 = sst [smem:[#allocation16]] [#allocation19]
    $region37: #{tpu_custom_call.1} parent=1 // pred_fallthru
      _
    %79 = shalt.err (0)
    %s81 = sshll.u32 [#allocation4], 4
    %s82 = int_to_ptr.vmem [resolvable:$true] %s81
    %84 = dma.hbm_to_vmem [thread:$0]  %s3, 8192, %s82, %s73
    %s85 = scalar_lea.sflag [#allocation6], 3
    // Predicated region
    $region38: #{tpu_custom_call.1} parent=1 // pred_check
      _
    $region39: #{tpu_custom_call.1} parent=1 // pred_check_branch
      %87 = sbr.rel target = $region41
    $region40: #{tpu_custom_call.1} parent=1 // pred_region
      %88 = sst [smem:[#allocation15]] [#allocation22]
      %89 = sst [smem:[#allocation16]] [#allocation21]
    $region41: #{tpu_custom_call.1} parent=1 // pred_fallthru
      _
    %91 = shalt.err (0)
    %s93 = sshll.u32 [#allocation5], 4
    %s94 = int_to_ptr.vmem [resolvable:$true] %s93
    %96 = dma.hbm_to_vmem [thread:$0]  %s4, 8192, %s94, %s85
    %v97 = vld [vmem:[#allocation7] sm:$0xff]
    %v98 = vld [vmem:[#allocation7 + $0x8] sm:$0xff]
    %v99 = vld [vmem:[#allocation7 + $0x10] sm:$0xff]
    %v100 = vld [vmem:[#allocation7 + $0x18] sm:$0xff]
    %v101 = vld [vmem:[#allocation7 + $0x20] sm:$0xff]
    %v102 = vld [vmem:[#allocation7 + $0x28] sm:$0xff]
    %v103 = vld [vmem:[#allocation7 + $0x30] sm:$0xff]
    %v104 = vld [vmem:[#allocation7 + $0x38] sm:$0xff]
    %v105 = vld [vmem:[#allocation7 + $0x40] sm:$0xff]
    %v106 = vld [vmem:[#allocation7 + $0x48] sm:$0xff]
    %v107 = vld [vmem:[#allocation7 + $0x50] sm:$0xff]
    %v108 = vld [vmem:[#allocation7 + $0x58] sm:$0xff]
    %v109 = vld [vmem:[#allocation7 + $0x60] sm:$0xff]
    %v110 = vld [vmem:[#allocation7 + $0x68] sm:$0xff]
    %v111 = vld [vmem:[#allocation7 + $0x70] sm:$0xff]
    %v112 = vld [vmem:[#allocation7 + $0x78] sm:$0xff]
    %s113 = smul.u32 8, 32
    %s114 = smul.u32 %s113, 2
    %s115 = sshll.u32 %s114, 4
    %116 = dma.done [#allocation6], %s115
    %v117 = vld [vmem:[#allocation2] sm:$0xff]
    %v118 = vld [vmem:[#allocation2 + $0x8] sm:$0xff]
    %v119 = vld [vmem:[#allocation2 + $0x10] sm:$0xff]
    %v120 = vld [vmem:[#allocation2 + $0x18] sm:$0xff]
    %v121 = vld [vmem:[#allocation2 + $0x20] sm:$0xff]
    %v122 = vld [vmem:[#allocation2 + $0x28] sm:$0xff]
    %v123 = vld [vmem:[#allocation2 + $0x30] sm:$0xff]
    %v124 = vld [vmem:[#allocation2 + $0x38] sm:$0xff]
    %v125 = vld [vmem:[#allocation2 + $0x40] sm:$0xff]
    %v126 = vld [vmem:[#allocation2 + $0x48] sm:$0xff]
    %v127 = vld [vmem:[#allocation2 + $0x50] sm:$0xff]
    %v128 = vld [vmem:[#allocation2 + $0x58] sm:$0xff]
    %v129 = vld [vmem:[#allocation2 + $0x60] sm:$0xff]
    %v130 = vld [vmem:[#allocation2 + $0x68] sm:$0xff]
    %v131 = vld [vmem:[#allocation2 + $0x70] sm:$0xff]
    %v132 = vld [vmem:[#allocation2 + $0x78] sm:$0xff]
    %v133 = vld [vmem:[#allocation2 + $0x80] sm:$0xff]
    %v134 = vld [vmem:[#allocation2 + $0x88] sm:$0xff]
    %v135 = vld [vmem:[#allocation2 + $0x90] sm:$0xff]
    %v136 = vld [vmem:[#allocation2 + $0x98] sm:$0xff]
    %v137 = vld [vmem:[#allocation2 + $0xa0] sm:$0xff]
    %v138 = vld [vmem:[#allocation2 + $0xa8] sm:$0xff]
    %v139 = vld [vmem:[#allocation2 + $0xb0] sm:$0xff]
    %v140 = vld [vmem:[#allocation2 + $0xb8] sm:$0xff]
    %v141 = vld [vmem:[#allocation2 + $0xc0] sm:$0xff]
    %v142 = vld [vmem:[#allocation2 + $0xc8] sm:$0xff]
    %v143 = vld [vmem:[#allocation2 + $0xd0] sm:$0xff]
    %v144 = vld [vmem:[#allocation2 + $0xd8] sm:$0xff]
    %v145 = vld [vmem:[#allocation2 + $0xe0] sm:$0xff]
    %v146 = vld [vmem:[#allocation2 + $0xe8] sm:$0xff]
    %v147 = vld [vmem:[#allocation2 + $0xf0] sm:$0xff]
    %v148 = vld [vmem:[#allocation2 + $0xf8] sm:$0xff]
    %v149 = vld [vmem:[#allocation2 + $0x100] sm:$0xff]
    %v150 = vld [vmem:[#allocation2 + $0x108] sm:$0xff]
    %v151 = vld [vmem:[#allocation2 + $0x110] sm:$0xff]
    %v152 = vld [vmem:[#allocation2 + $0x118] sm:$0xff]
    %v153 = vld [vmem:[#allocation2 + $0x120] sm:$0xff]
    %v154 = vld [vmem:[#allocation2 + $0x128] sm:$0xff]
    %v155 = vld [vmem:[#allocation2 + $0x130] sm:$0xff]
    %v156 = vld [vmem:[#allocation2 + $0x138] sm:$0xff]
    %v157 = vld [vmem:[#allocation2 + $0x140] sm:$0xff]
    %v158 = vld [vmem:[#allocation2 + $0x148] sm:$0xff]
    %v159 = vld [vmem:[#allocation2 + $0x150] sm:$0xff]
    %v160 = vld [vmem:[#allocation2 + $0x158] sm:$0xff]
    %v161 = vld [vmem:[#allocation2 + $0x160] sm:$0xff]
    %v162 = vld [vmem:[#allocation2 + $0x168] sm:$0xff]
    %v163 = vld [vmem:[#allocation2 + $0x170] sm:$0xff]
    %v164 = vld [vmem:[#allocation2 + $0x178] sm:$0xff]
    %v165 = vld [vmem:[#allocation2 + $0x180] sm:$0xff]
    %v166 = vld [vmem:[#allocation2 + $0x188] sm:$0xff]
    %v167 = vld [vmem:[#allocation2 + $0x190] sm:$0xff]
    %v168 = vld [vmem:[#allocation2 + $0x198] sm:$0xff]
    %v169 = vld [vmem:[#allocation2 + $0x1a0] sm:$0xff]
    %v170 = vld [vmem:[#allocation2 + $0x1a8] sm:$0xff]
    %v171 = vld [vmem:[#allocation2 + $0x1b0] sm:$0xff]
    %v172 = vld [vmem:[#allocation2 + $0x1b8] sm:$0xff]
    %v173 = vld [vmem:[#allocation2 + $0x1c0] sm:$0xff]
    %v174 = vld [vmem:[#allocation2 + $0x1c8] sm:$0xff]
    %v175 = vld [vmem:[#allocation2 + $0x1d0] sm:$0xff]
    %v176 = vld [vmem:[#allocation2 + $0x1d8] sm:$0xff]
    %v177 = vld [vmem:[#allocation2 + $0x1e0] sm:$0xff]
    %v178 = vld [vmem:[#allocation2 + $0x1e8] sm:$0xff]
    %v179 = vld [vmem:[#allocation2 + $0x1f0] sm:$0xff]
    %v180 = vld [vmem:[#allocation2 + $0x1f8] sm:$0xff]
    %181 = vmatprep.subr.mxu0 %v148
    %182 = vmatpush1.msra.mxu0 %v147
    %183 = vmatprep.subr.mxu0 %v146
    %184 = vmatpush1.msra.mxu0 %v145
    %185 = vmatprep.subr.mxu0 %v144
    %186 = vmatpush1.msra.mxu0 %v143
    %187 = vmatprep.subr.mxu0 %v142
    %188 = vmatpush1.msra.mxu0 %v141
    %189 = vmatprep.subr.mxu0 %v140
    %190 = vmatpush1.msra.mxu0 %v139
    %191 = vmatprep.subr.mxu0 %v138
    %192 = vmatpush1.msra.mxu0 %v137
    %193 = vmatprep.subr.mxu0 %v136
    %194 = vmatpush1.msra.mxu0 %v135
    %195 = vmatprep.subr.mxu0 %v134
    %196 = vmatpush1.msra.mxu0 %v133
    %197 = vmatprep.subr.mxu0 %v132
    %198 = vmatpush1.msra.mxu0 %v131
    %199 = vmatprep.subr.mxu0 %v130
    %200 = vmatpush1.msra.mxu0 %v129
    %201 = vmatprep.subr.mxu0 %v128
    %202 = vmatpush1.msra.mxu0 %v127
    %203 = vmatprep.subr.mxu0 %v126
    %204 = vmatpush1.msra.mxu0 %v125
    %205 = vmatprep.subr.mxu0 %v124
    %206 = vmatpush1.msra.mxu0 %v123
    %207 = vmatprep.subr.mxu0 %v122
    %208 = vmatpush1.msra.mxu0 %v121
    %209 = vmatprep.subr.mxu0 %v120
    %210 = vmatpush1.msra.mxu0 %v119
    %211 = vmatprep.subr.mxu0 %v118
    %212 = vmatpush1.msra.mxu0 %v117
    %213 = vmatprep.subr.mxu0 %v180
    %214 = vmatpush2.msra.mxu0 %v179
    %215 = vmatprep.subr.mxu0 %v178
    %216 = vmatpush2.msra.mxu0 %v177
    %217 = vmatprep.subr.mxu0 %v176
    %218 = vmatpush2.msra.mxu0 %v175
    %219 = vmatprep.subr.mxu0 %v174
    %220 = vmatpush2.msra.mxu0 %v173
    %221 = vmatprep.subr.mxu0 %v172
    %222 = vmatpush2.msra.mxu0 %v171
    %223 = vmatprep.subr.mxu0 %v170
    %224 = vmatpush2.msra.mxu0 %v169
    %225 = vmatprep.subr.mxu0 %v168
    %226 = vmatpush2.msra.mxu0 %v167
    %227 = vmatprep.subr.mxu0 %v166
    %228 = vmatpush2.msra.mxu0 %v165
    %229 = vmatprep.subr.mxu0 %v164
    %230 = vmatpush2.msra.mxu0 %v163
    %231 = vmatprep.subr.mxu0 %v162
    %232 = vmatpush2.msra.mxu0 %v161
    %233 = vmatprep.subr.mxu0 %v160
    %234 = vmatpush2.msra.mxu0 %v159
    %235 = vmatprep.subr.mxu0 %v158
    %236 = vmatpush2.msra.mxu0 %v157
    %237 = vmatprep.subr.mxu0 %v156
    %238 = vmatpush2.msra.mxu0 %v155
    %239 = vmatprep.subr.mxu0 %v154
    %240 = vmatpush2.msra.mxu0 %v153
    %241 = vmatprep.subr.mxu0 %v152
    %242 = vmatpush2.msra.mxu0 %v151
    %243 = vmatprep.subr.mxu0 %v150
    %244 = vmatpush2.msra.mxu0 %v149
    %245 = vmatprep.mubr.f32.mxu0 %v98
    %246 = vmatmul.mubr.f32.gmra.mxu0 %v97
    %v247 = vpop.f32.mrf.mxu0
    %v248 = vadd.f32 0.0, %v247
    %v249 = vpop.f32.mrf.mxu0
    %v250 = vadd.f32 0.0, %v249
    %251 = vmatprep.mubr.f32.mxu0 %v100
    %252 = vmatmul.mubr.f32.gmra.mxu0 %v99
    %v253 = vpop.f32.mrf.mxu0
    %v254 = vadd.f32 0.0, %v253
    %v255 = vpop.f32.mrf.mxu0
    %v256 = vadd.f32 0.0, %v255
    %257 = vmatprep.mubr.f32.mxu0 %v102
    %258 = vmatmul.mubr.f32.gmra.mxu0 %v101
    %v259 = vpop.f32.mrf.mxu0
    %v260 = vadd.f32 0.0, %v259
    %v261 = vpop.f32.mrf.mxu0
    %v262 = vadd.f32 0.0, %v261
    %263 = vmatprep.mubr.f32.mxu0 %v104
    %264 = vmatmul.mubr.f32.gmra.mxu0 %v103
    %v265 = vpop.f32.mrf.mxu0
    %v266 = vadd.f32 0.0, %v265
    %v267 = vpop.f32.mrf.mxu0
    %v268 = vadd.f32 0.0, %v267
    %269 = vmatprep.mubr.f32.mxu0 %v106
    %270 = vmatmul.mubr.f32.gmra.mxu0 %v105
    %v271 = vpop.f32.mrf.mxu0
    %v272 = vadd.f32 0.0, %v271
    %v273 = vpop.f32.mrf.mxu0
    %v274 = vadd.f32 0.0, %v273
    %275 = vmatprep.mubr.f32.mxu0 %v108
    %276 = vmatmul.mubr.f32.gmra.mxu0 %v107
    %v277 = vpop.f32.mrf.mxu0
    %v278 = vadd.f32 0.0, %v277
    %v279 = vpop.f32.mrf.mxu0
    %v280 = vadd.f32 0.0, %v279
    %281 = vmatprep.mubr.f32.mxu0 %v110
    %282 = vmatmul.mubr.f32.gmra.mxu0 %v109
    %v283 = vpop.f32.mrf.mxu0
    %v284 = vadd.f32 0.0, %v283
    %v285 = vpop.f32.mrf.mxu0
    %v286 = vadd.f32 0.0, %v285
    %287 = vmatprep.mubr.f32.mxu0 %v112
    %288 = vmatmul.mubr.f32.gmra.mxu0 %v111
    %v289 = vpop.f32.mrf.mxu0
    %v290 = vadd.f32 0.0, %v289
    %v291 = vpop.f32.mrf.mxu0
    %v292 = vadd.f32 0.0, %v291
    %293 = vdwg.mxu0
    %v294 = vmax.f32 %v248, 0.0
    %v295 = vmax.f32 %v250, 0.0
    %v296 = vmax.f32 %v254, 0.0
    %v297 = vmax.f32 %v256, 0.0
    %v298 = vmax.f32 %v260, 0.0
    %v299 = vmax.f32 %v262, 0.0
    %v300 = vmax.f32 %v266, 0.0
    %v301 = vmax.f32 %v268, 0.0
    %v302 = vmax.f32 %v272, 0.0
    %v303 = vmax.f32 %v274, 0.0
    %v304 = vmax.f32 %v278, 0.0
    %v305 = vmax.f32 %v280, 0.0
    %v306 = vmax.f32 %v284, 0.0
    %v307 = vmax.f32 %v286, 0.0
    %v308 = vmax.f32 %v290, 0.0
    %v309 = vmax.f32 %v292, 0.0
    %s310 = sshll.u32 %s114, 4
    %311 = dma.done %s61, %s310
    %v312 = vld [vmem:[#allocation3] sm:$0xff]
    %v313 = vld [vmem:[#allocation3 + $0x8] sm:$0xff]
    %v314 = vld [vmem:[#allocation3 + $0x10] sm:$0xff]
    %v315 = vld [vmem:[#allocation3 + $0x18] sm:$0xff]
    %v316 = vld [vmem:[#allocation3 + $0x20] sm:$0xff]
    %v317 = vld [vmem:[#allocation3 + $0x28] sm:$0xff]
    %v318 = vld [vmem:[#allocation3 + $0x30] sm:$0xff]
    %v319 = vld [vmem:[#allocation3 + $0x38] sm:$0xff]
    %v320 = vld [vmem:[#allocation3 + $0x40] sm:$0xff]
    %v321 = vld [vmem:[#allocation3 + $0x48] sm:$0xff]
    %v322 = vld [vmem:[#allocation3 + $0x50] sm:$0xff]
    %v323 = vld [vmem:[#allocation3 + $0x58] sm:$0xff]
    %v324 = vld [vmem:[#allocation3 + $0x60] sm:$0xff]
    %v325 = vld [vmem:[#allocation3 + $0x68] sm:$0xff]
    %v326 = vld [vmem:[#allocation3 + $0x70] sm:$0xff]
    %v327 = vld [vmem:[#allocation3 + $0x78] sm:$0xff]
    %v328 = vld [vmem:[#allocation3 + $0x80] sm:$0xff]
    %v329 = vld [vmem:[#allocation3 + $0x88] sm:$0xff]
    %v330 = vld [vmem:[#allocation3 + $0x90] sm:$0xff]
    %v331 = vld [vmem:[#allocation3 + $0x98] sm:$0xff]
    %v332 = vld [vmem:[#allocation3 + $0xa0] sm:$0xff]
    %v333 = vld [vmem:[#allocation3 + $0xa8] sm:$0xff]
    %v334 = vld [vmem:[#allocation3 + $0xb0] sm:$0xff]
    %v335 = vld [vmem:[#allocation3 + $0xb8] sm:$0xff]
    %v336 = vld [vmem:[#allocation3 + $0xc0] sm:$0xff]
    %v337 = vld [vmem:[#allocation3 + $0xc8] sm:$0xff]
    %v338 = vld [vmem:[#allocation3 + $0xd0] sm:$0xff]
    %v339 = vld [vmem:[#allocation3 + $0xd8] sm:$0xff]
    %v340 = vld [vmem:[#allocation3 + $0xe0] sm:$0xff]
    %v341 = vld [vmem:[#allocation3 + $0xe8] sm:$0xff]
    %v342 = vld [vmem:[#allocation3 + $0xf0] sm:$0xff]
    %v343 = vld [vmem:[#allocation3 + $0xf8] sm:$0xff]
    %v344 = vld [vmem:[#allocation3 + $0x100] sm:$0xff]
    %v345 = vld [vmem:[#allocation3 + $0x108] sm:$0xff]
    %v346 = vld [vmem:[#allocation3 + $0x110] sm:$0xff]
    %v347 = vld [vmem:[#allocation3 + $0x118] sm:$0xff]
    %v348 = vld [vmem:[#allocation3 + $0x120] sm:$0xff]
    %v349 = vld [vmem:[#allocation3 + $0x128] sm:$0xff]
    %v350 = vld [vmem:[#allocation3 + $0x130] sm:$0xff]
    %v351 = vld [vmem:[#allocation3 + $0x138] sm:$0xff]
    %v352 = vld [vmem:[#allocation3 + $0x140] sm:$0xff]
    %v353 = vld [vmem:[#allocation3 + $0x148] sm:$0xff]
    %v354 = vld [vmem:[#allocation3 + $0x150] sm:$0xff]
    %v355 = vld [vmem:[#allocation3 + $0x158] sm:$0xff]
    %v356 = vld [vmem:[#allocation3 + $0x160] sm:$0xff]
    %v357 = vld [vmem:[#allocation3 + $0x168] sm:$0xff]
    %v358 = vld [vmem:[#allocation3 + $0x170] sm:$0xff]
    %v359 = vld [vmem:[#allocation3 + $0x178] sm:$0xff]
    %v360 = vld [vmem:[#allocation3 + $0x180] sm:$0xff]
    %v361 = vld [vmem:[#allocation3 + $0x188] sm:$0xff]
    %v362 = vld [vmem:[#allocation3 + $0x190] sm:$0xff]
    %v363 = vld [vmem:[#allocation3 + $0x198] sm:$0xff]
    %v364 = vld [vmem:[#allocation3 + $0x1a0] sm:$0xff]
    %v365 = vld [vmem:[#allocation3 + $0x1a8] sm:$0xff]
    %v366 = vld [vmem:[#allocation3 + $0x1b0] sm:$0xff]
    %v367 = vld [vmem:[#allocation3 + $0x1b8] sm:$0xff]
    %v368 = vld [vmem:[#allocation3 + $0x1c0] sm:$0xff]
    %v369 = vld [vmem:[#allocation3 + $0x1c8] sm:$0xff]
    %v370 = vld [vmem:[#allocation3 + $0x1d0] sm:$0xff]
    %v371 = vld [vmem:[#allocation3 + $0x1d8] sm:$0xff]
    %v372 = vld [vmem:[#allocation3 + $0x1e0] sm:$0xff]
    %v373 = vld [vmem:[#allocation3 + $0x1e8] sm:$0xff]
    %v374 = vld [vmem:[#allocation3 + $0x1f0] sm:$0xff]
    %v375 = vld [vmem:[#allocation3 + $0x1f8] sm:$0xff]
    %v376 = vld [vmem:[#allocation10] sm:$0xff]
    %v377 = vld [vmem:[#allocation10 + $0x8] sm:$0xff]
    %v378 = vld [vmem:[#allocation10 + $0x10] sm:$0xff]
    %v379 = vld [vmem:[#allocation10 + $0x18] sm:$0xff]
    %v380 = vld [vmem:[#allocation10 + $0x20] sm:$0xff]
    %v381 = vld [vmem:[#allocation10 + $0x28] sm:$0xff]
    %v382 = vld [vmem:[#allocation10 + $0x30] sm:$0xff]
    %v383 = vld [vmem:[#allocation10 + $0x38] sm:$0xff]
    %v384 = vld [vmem:[#allocation10 + $0x40] sm:$0xff]
    %v385 = vld [vmem:[#allocation10 + $0x48] sm:$0xff]
    %v386 = vld [vmem:[#allocation10 + $0x50] sm:$0xff]
    %v387 = vld [vmem:[#allocation10 + $0x58] sm:$0xff]
    %v388 = vld [vmem:[#allocation10 + $0x60] sm:$0xff]
    %v389 = vld [vmem:[#allocation10 + $0x68] sm:$0xff]
    %v390 = vld [vmem:[#allocation10 + $0x70] sm:$0xff]
    %v391 = vld [vmem:[#allocation10 + $0x78] sm:$0xff]
    %392 = vmatprep.subr.mxu0 %v343
    %393 = vmatpush1.msra.mxu0 %v342
    %394 = vmatprep.subr.mxu0 %v341
    %395 = vmatpush1.msra.mxu0 %v340
    %396 = vmatprep.subr.mxu0 %v339
    %397 = vmatpush1.msra.mxu0 %v338
    %398 = vmatprep.subr.mxu0 %v337
    %399 = vmatpush1.msra.mxu0 %v336
    %400 = vmatprep.subr.mxu0 %v335
    %401 = vmatpush1.msra.mxu0 %v334
    %402 = vmatprep.subr.mxu0 %v333
    %403 = vmatpush1.msra.mxu0 %v332
    %404 = vmatprep.subr.mxu0 %v331
    %405 = vmatpush1.msra.mxu0 %v330
    %406 = vmatprep.subr.mxu0 %v329
    %407 = vmatpush1.msra.mxu0 %v328
    %408 = vmatprep.subr.mxu0 %v327
    %409 = vmatpush1.msra.mxu0 %v326
    %410 = vmatprep.subr.mxu0 %v325
    %411 = vmatpush1.msra.mxu0 %v324
    %412 = vmatprep.subr.mxu0 %v323
    %413 = vmatpush1.msra.mxu0 %v322
    %414 = vmatprep.subr.mxu0 %v321
    %415 = vmatpush1.msra.mxu0 %v320
    %416 = vmatprep.subr.mxu0 %v319
    %417 = vmatpush1.msra.mxu0 %v318
    %418 = vmatprep.subr.mxu0 %v317
    %419 = vmatpush1.msra.mxu0 %v316
    %420 = vmatprep.subr.mxu0 %v315
    %421 = vmatpush1.msra.mxu0 %v314
    %422 = vmatprep.subr.mxu0 %v313
    %423 = vmatpush1.msra.mxu0 %v312
    %424 = vmatprep.subr.mxu0 %v375
    %425 = vmatpush2.msra.mxu0 %v374
    %426 = vmatprep.subr.mxu0 %v373
    %427 = vmatpush2.msra.mxu0 %v372
    %428 = vmatprep.subr.mxu0 %v371
    %429 = vmatpush2.msra.mxu0 %v370
    %430 = vmatprep.subr.mxu0 %v369
    %431 = vmatpush2.msra.mxu0 %v368
    %432 = vmatprep.subr.mxu0 %v367
    %433 = vmatpush2.msra.mxu0 %v366
    %434 = vmatprep.subr.mxu0 %v365
    %435 = vmatpush2.msra.mxu0 %v364
    %436 = vmatprep.subr.mxu0 %v363
    %437 = vmatpush2.msra.mxu0 %v362
    %438 = vmatprep.subr.mxu0 %v361
    %439 = vmatpush2.msra.mxu0 %v360
    %440 = vmatprep.subr.mxu0 %v359
    %441 = vmatpush2.msra.mxu0 %v358
    %442 = vmatprep.subr.mxu0 %v357
    %443 = vmatpush2.msra.mxu0 %v356
    %444 = vmatprep.subr.mxu0 %v355
    %445 = vmatpush2.msra.mxu0 %v354
    %446 = vmatprep.subr.mxu0 %v353
    %447 = vmatpush2.msra.mxu0 %v352
    %448 = vmatprep.subr.mxu0 %v351
    %449 = vmatpush2.msra.mxu0 %v350
    %450 = vmatprep.subr.mxu0 %v349
    %451 = vmatpush2.msra.mxu0 %v348
    %452 = vmatprep.subr.mxu0 %v347
    %453 = vmatpush2.msra.mxu0 %v346
    %454 = vmatprep.subr.mxu0 %v345
    %455 = vmatpush2.msra.mxu0 %v344
    %456 = vmatprep.mubr.f32.mxu0 %v295
    %457 = vmatmul.mubr.f32.gmra.mxu0 %v294
    %v458 = vpop.f32.mrf.mxu0
    %v459 = vadd.f32 %v376, %v458
    %v460 = vpop.f32.mrf.mxu0
    %v461 = vadd.f32 %v377, %v460
    %462 = vmatprep.mubr.f32.mxu0 %v297
    %463 = vmatmul.mubr.f32.gmra.mxu0 %v296
    %v464 = vpop.f32.mrf.mxu0
    %v465 = vadd.f32 %v378, %v464
    %v466 = vpop.f32.mrf.mxu0
    %v467 = vadd.f32 %v379, %v466
    %468 = vmatprep.mubr.f32.mxu0 %v299
    %469 = vmatmul.mubr.f32.gmra.mxu0 %v298
    %v470 = vpop.f32.mrf.mxu0
    %v471 = vadd.f32 %v380, %v470
    %v472 = vpop.f32.mrf.mxu0
    %v473 = vadd.f32 %v381, %v472
    %474 = vmatprep.mubr.f32.mxu0 %v301
    %475 = vmatmul.mubr.f32.gmra.mxu0 %v300
    %v476 = vpop.f32.mrf.mxu0
    %v477 = vadd.f32 %v382, %v476
    %v478 = vpop.f32.mrf.mxu0
    %v479 = vadd.f32 %v383, %v478
    %480 = vmatprep.mubr.f32.mxu0 %v303
    %481 = vmatmul.mubr.f32.gmra.mxu0 %v302
    %v482 = vpop.f32.mrf.mxu0
    %v483 = vadd.f32 %v384, %v482
    %v484 = vpop.f32.mrf.mxu0
    %v485 = vadd.f32 %v385, %v484
    %486 = vmatprep.mubr.f32.mxu0 %v305
    %487 = vmatmul.mubr.f32.gmra.mxu0 %v304
    %v488 = vpop.f32.mrf.mxu0
    %v489 = vadd.f32 %v386, %v488
    %v490 = vpop.f32.mrf.mxu0
    %v491 = vadd.f32 %v387, %v490
    %492 = vmatprep.mubr.f32.mxu0 %v307
    %493 = vmatmul.mubr.f32.gmra.mxu0 %v306
    %v494 = vpop.f32.mrf.mxu0
    %v495 = vadd.f32 %v388, %v494
    %v496 = vpop.f32.mrf.mxu0
    %v497 = vadd.f32 %v389, %v496
    %498 = vmatprep.mubr.f32.mxu0 %v309
    %499 = vmatmul.mubr.f32.gmra.mxu0 %v308
    %v500 = vpop.f32.mrf.mxu0
    %v501 = vadd.f32 %v390, %v500
    %v502 = vpop.f32.mrf.mxu0
    %v503 = vadd.f32 %v391, %v502
    %504 = vdwg.mxu0
    %s505 = sshll.u32 %s114, 4
    %506 = dma.done %s73, %s505
    %v507 = vld [vmem:[#allocation4] sm:$0xff]
    %v508 = vld [vmem:[#allocation4 + $0x8] sm:$0xff]
    %v509 = vld [vmem:[#allocation4 + $0x10] sm:$0xff]
    %v510 = vld [vmem:[#allocation4 + $0x18] sm:$0xff]
    %v511 = vld [vmem:[#allocation4 + $0x20] sm:$0xff]
    %v512 = vld [vmem:[#allocation4 + $0x28] sm:$0xff]
    %v513 = vld [vmem:[#allocation4 + $0x30] sm:$0xff]
    %v514 = vld [vmem:[#allocation4 + $0x38] sm:$0xff]
    %v515 = vld [vmem:[#allocation4 + $0x40] sm:$0xff]
    %v516 = vld [vmem:[#allocation4 + $0x48] sm:$0xff]
    %v517 = vld [vmem:[#allocation4 + $0x50] sm:$0xff]
    %v518 = vld [vmem:[#allocation4 + $0x58] sm:$0xff]
    %v519 = vld [vmem:[#allocation4 + $0x60] sm:$0xff]
    %v520 = vld [vmem:[#allocation4 + $0x68] sm:$0xff]
    %v521 = vld [vmem:[#allocation4 + $0x70] sm:$0xff]
    %v522 = vld [vmem:[#allocation4 + $0x78] sm:$0xff]
    %v523 = vld [vmem:[#allocation4 + $0x80] sm:$0xff]
    %v524 = vld [vmem:[#allocation4 + $0x88] sm:$0xff]
    %v525 = vld [vmem:[#allocation4 + $0x90] sm:$0xff]
    %v526 = vld [vmem:[#allocation4 + $0x98] sm:$0xff]
    %v527 = vld [vmem:[#allocation4 + $0xa0] sm:$0xff]
    %v528 = vld [vmem:[#allocation4 + $0xa8] sm:$0xff]
    %v529 = vld [vmem:[#allocation4 + $0xb0] sm:$0xff]
    %v530 = vld [vmem:[#allocation4 + $0xb8] sm:$0xff]
    %v531 = vld [vmem:[#allocation4 + $0xc0] sm:$0xff]
    %v532 = vld [vmem:[#allocation4 + $0xc8] sm:$0xff]
    %v533 = vld [vmem:[#allocation4 + $0xd0] sm:$0xff]
    %v534 = vld [vmem:[#allocation4 + $0xd8] sm:$0xff]
    %v535 = vld [vmem:[#allocation4 + $0xe0] sm:$0xff]
    %v536 = vld [vmem:[#allocation4 + $0xe8] sm:$0xff]
    %v537 = vld [vmem:[#allocation4 + $0xf0] sm:$0xff]
    %v538 = vld [vmem:[#allocation4 + $0xf8] sm:$0xff]
    %v539 = vld [vmem:[#allocation4 + $0x100] sm:$0xff]
    %v540 = vld [vmem:[#allocation4 + $0x108] sm:$0xff]
    %v541 = vld [vmem:[#allocation4 + $0x110] sm:$0xff]
    %v542 = vld [vmem:[#allocation4 + $0x118] sm:$0xff]
    %v543 = vld [vmem:[#allocation4 + $0x120] sm:$0xff]
    %v544 = vld [vmem:[#allocation4 + $0x128] sm:$0xff]
    %v545 = vld [vmem:[#allocation4 + $0x130] sm:$0xff]
    %v546 = vld [vmem:[#allocation4 + $0x138] sm:$0xff]
    %v547 = vld [vmem:[#allocation4 + $0x140] sm:$0xff]
    %v548 = vld [vmem:[#allocation4 + $0x148] sm:$0xff]
    %v549 = vld [vmem:[#allocation4 + $0x150] sm:$0xff]
    %v550 = vld [vmem:[#allocation4 + $0x158] sm:$0xff]
    %v551 = vld [vmem:[#allocation4 + $0x160] sm:$0xff]
    %v552 = vld [vmem:[#allocation4 + $0x168] sm:$0xff]
    %v553 = vld [vmem:[#allocation4 + $0x170] sm:$0xff]
    %v554 = vld [vmem:[#allocation4 + $0x178] sm:$0xff]
    %v555 = vld [vmem:[#allocation4 + $0x180] sm:$0xff]
    %v556 = vld [vmem:[#allocation4 + $0x188] sm:$0xff]
    %v557 = vld [vmem:[#allocation4 + $0x190] sm:$0xff]
    %v558 = vld [vmem:[#allocation4 + $0x198] sm:$0xff]
    %v559 = vld [vmem:[#allocation4 + $0x1a0] sm:$0xff]
    %v560 = vld [vmem:[#allocation4 + $0x1a8] sm:$0xff]
    %v561 = vld [vmem:[#allocation4 + $0x1b0] sm:$0xff]
    %v562 = vld [vmem:[#allocation4 + $0x1b8] sm:$0xff]
    %v563 = vld [vmem:[#allocation4 + $0x1c0] sm:$0xff]
    %v564 = vld [vmem:[#allocation4 + $0x1c8] sm:$0xff]
    %v565 = vld [vmem:[#allocation4 + $0x1d0] sm:$0xff]
    %v566 = vld [vmem:[#allocation4 + $0x1d8] sm:$0xff]
    %v567 = vld [vmem:[#allocation4 + $0x1e0] sm:$0xff]
    %v568 = vld [vmem:[#allocation4 + $0x1e8] sm:$0xff]
    %v569 = vld [vmem:[#allocation4 + $0x1f0] sm:$0xff]
    %v570 = vld [vmem:[#allocation4 + $0x1f8] sm:$0xff]
    %v571 = vld [vmem:[%s5] sm:$0x3]
    %v573 = vlaneseq
    %v574 = vshrl.u32 %v573, 7
    %v575 = vsub.s32 0, %v574
    %v576 = vrot.slane %v571, %v575
    %v577 = vlaneseq
    %v578 = vshrl.u32 %v577, 7
    %v579 = vsub.s32 1, %v578
    %v580 = vrot.slane %v571, %v579
    %583 = vmatprep.subr.mxu0 %v538
    %584 = vmatpush1.msra.mxu0 %v537
    %585 = vmatprep.subr.mxu0 %v536
    %586 = vmatpush1.msra.mxu0 %v535
    %587 = vmatprep.subr.mxu0 %v534
    %588 = vmatpush1.msra.mxu0 %v533
    %589 = vmatprep.subr.mxu0 %v532
    %590 = vmatpush1.msra.mxu0 %v531
    %591 = vmatprep.subr.mxu0 %v530
    %592 = vmatpush1.msra.mxu0 %v529
    %593 = vmatprep.subr.mxu0 %v528
    %594 = vmatpush1.msra.mxu0 %v527
    %595 = vmatprep.subr.mxu0 %v526
    %596 = vmatpush1.msra.mxu0 %v525
    %597 = vmatprep.subr.mxu0 %v524
    %598 = vmatpush1.msra.mxu0 %v523
    %599 = vmatprep.subr.mxu0 %v522
    %600 = vmatpush1.msra.mxu0 %v521
    %601 = vmatprep.subr.mxu0 %v520
    %602 = vmatpush1.msra.mxu0 %v519
    %603 = vmatprep.subr.mxu0 %v518
    %604 = vmatpush1.msra.mxu0 %v517
    %605 = vmatprep.subr.mxu0 %v516
    %606 = vmatpush1.msra.mxu0 %v515
    %607 = vmatprep.subr.mxu0 %v514
    %608 = vmatpush1.msra.mxu0 %v513
    %609 = vmatprep.subr.mxu0 %v512
    %610 = vmatpush1.msra.mxu0 %v511
    %611 = vmatprep.subr.mxu0 %v510
    %612 = vmatpush1.msra.mxu0 %v509
    %613 = vmatprep.subr.mxu0 %v508
    %614 = vmatpush1.msra.mxu0 %v507
    %615 = vmatprep.subr.mxu0 %v570
    %616 = vmatpush2.msra.mxu0 %v569
    %617 = vmatprep.subr.mxu0 %v568
    %618 = vmatpush2.msra.mxu0 %v567
    %619 = vmatprep.subr.mxu0 %v566
    %620 = vmatpush2.msra.mxu0 %v565
    %621 = vmatprep.subr.mxu0 %v564
    %622 = vmatpush2.msra.mxu0 %v563
    %623 = vmatprep.subr.mxu0 %v562
    %624 = vmatpush2.msra.mxu0 %v561
    %625 = vmatprep.subr.mxu0 %v560
    %626 = vmatpush2.msra.mxu0 %v559
    %627 = vmatprep.subr.mxu0 %v558
    %628 = vmatpush2.msra.mxu0 %v557
    %629 = vmatprep.subr.mxu0 %v556
    %630 = vmatpush2.msra.mxu0 %v555
    %631 = vmatprep.subr.mxu0 %v554
    %632 = vmatpush2.msra.mxu0 %v553
    %633 = vmatprep.subr.mxu0 %v552
    %634 = vmatpush2.msra.mxu0 %v551
    %635 = vmatprep.subr.mxu0 %v550
    %636 = vmatpush2.msra.mxu0 %v549
    %637 = vmatprep.subr.mxu0 %v548
    %638 = vmatpush2.msra.mxu0 %v547
    %639 = vmatprep.subr.mxu0 %v546
    %640 = vmatpush2.msra.mxu0 %v545
    %641 = vmatprep.subr.mxu0 %v544
    %642 = vmatpush2.msra.mxu0 %v543
    %643 = vmatprep.subr.mxu0 %v542
    %644 = vmatpush2.msra.mxu0 %v541
    %645 = vmatprep.subr.mxu0 %v540
    %646 = vmatpush2.msra.mxu0 %v539
    %647 = vmatprep.mubr.f32.mxu0 %v461
    %648 = vmatmul.mubr.f32.gmra.mxu0 %v459
    %v649 = vpop.f32.mrf.mxu0
    %v650 = vadd.f32 %v576, %v649
    %v651 = vpop.f32.mrf.mxu0
    %v652 = vadd.f32 %v580, %v651
    %653 = vmatprep.mubr.f32.mxu0 %v467
    %654 = vmatmul.mubr.f32.gmra.mxu0 %v465
    %v655 = vpop.f32.mrf.mxu0
    %v656 = vadd.f32 %v576, %v655
    %v657 = vpop.f32.mrf.mxu0
    %v658 = vadd.f32 %v580, %v657
    %659 = vmatprep.mubr.f32.mxu0 %v473
    %660 = vmatmul.mubr.f32.gmra.mxu0 %v471
    %v661 = vpop.f32.mrf.mxu0
    %v662 = vadd.f32 %v576, %v661
    %v663 = vpop.f32.mrf.mxu0
    %v664 = vadd.f32 %v580, %v663
    %665 = vmatprep.mubr.f32.mxu0 %v479
    %666 = vmatmul.mubr.f32.gmra.mxu0 %v477
    %v667 = vpop.f32.mrf.mxu0
    %v668 = vadd.f32 %v576, %v667
    %v669 = vpop.f32.mrf.mxu0
    %v670 = vadd.f32 %v580, %v669
    %671 = vmatprep.mubr.f32.mxu0 %v485
    %672 = vmatmul.mubr.f32.gmra.mxu0 %v483
    %v673 = vpop.f32.mrf.mxu0
    %v674 = vadd.f32 %v576, %v673
    %v675 = vpop.f32.mrf.mxu0
    %v676 = vadd.f32 %v580, %v675
    %677 = vmatprep.mubr.f32.mxu0 %v491
    %678 = vmatmul.mubr.f32.gmra.mxu0 %v489
    %v679 = vpop.f32.mrf.mxu0
    %v680 = vadd.f32 %v576, %v679
    %v681 = vpop.f32.mrf.mxu0
    %v682 = vadd.f32 %v580, %v681
    %683 = vmatprep.mubr.f32.mxu0 %v497
    %684 = vmatmul.mubr.f32.gmra.mxu0 %v495
    %v685 = vpop.f32.mrf.mxu0
    %v686 = vadd.f32 %v576, %v685
    %v687 = vpop.f32.mrf.mxu0
    %v688 = vadd.f32 %v580, %v687
    %689 = vmatprep.mubr.f32.mxu0 %v503
    %690 = vmatmul.mubr.f32.gmra.mxu0 %v501
    %v691 = vpop.f32.mrf.mxu0
    %v692 = vadd.f32 %v576, %v691
    %v693 = vpop.f32.mrf.mxu0
    %v694 = vadd.f32 %v580, %v693
    %695 = vdwg.mxu0
    %v696 = vmax.f32 %v650, 0.0
    %v697 = vmax.f32 %v652, 0.0
    %v698 = vmax.f32 %v656, 0.0
    %v699 = vmax.f32 %v658, 0.0
    %v700 = vmax.f32 %v662, 0.0
    %v701 = vmax.f32 %v664, 0.0
    %v702 = vmax.f32 %v668, 0.0
    %v703 = vmax.f32 %v670, 0.0
    %v704 = vmax.f32 %v674, 0.0
    %v705 = vmax.f32 %v676, 0.0
    %v706 = vmax.f32 %v680, 0.0
    %v707 = vmax.f32 %v682, 0.0
    %v708 = vmax.f32 %v686, 0.0
    %v709 = vmax.f32 %v688, 0.0
    %v710 = vmax.f32 %v692, 0.0
    %v711 = vmax.f32 %v694, 0.0
    %s712 = sshll.u32 %s114, 4
    %713 = dma.done %s85, %s712
    %v714 = vld [vmem:[#allocation5] sm:$0xff]
    %v715 = vld [vmem:[#allocation5 + $0x8] sm:$0xff]
    %v716 = vld [vmem:[#allocation5 + $0x10] sm:$0xff]
    %v717 = vld [vmem:[#allocation5 + $0x18] sm:$0xff]
    %v718 = vld [vmem:[#allocation5 + $0x20] sm:$0xff]
    %v719 = vld [vmem:[#allocation5 + $0x28] sm:$0xff]
    %v720 = vld [vmem:[#allocation5 + $0x30] sm:$0xff]
    %v721 = vld [vmem:[#allocation5 + $0x38] sm:$0xff]
    %v722 = vld [vmem:[#allocation5 + $0x40] sm:$0xff]
    %v723 = vld [vmem:[#allocation5 + $0x48] sm:$0xff]
    %v724 = vld [vmem:[#allocation5 + $0x50] sm:$0xff]
    %v725 = vld [vmem:[#allocation5 + $0x58] sm:$0xff]
    %v726 = vld [vmem:[#allocation5 + $0x60] sm:$0xff]
    %v727 = vld [vmem:[#allocation5 + $0x68] sm:$0xff]
    %v728 = vld [vmem:[#allocation5 + $0x70] sm:$0xff]
    %v729 = vld [vmem:[#allocation5 + $0x78] sm:$0xff]
    %v730 = vld [vmem:[#allocation5 + $0x80] sm:$0xff]
    %v731 = vld [vmem:[#allocation5 + $0x88] sm:$0xff]
    %v732 = vld [vmem:[#allocation5 + $0x90] sm:$0xff]
    %v733 = vld [vmem:[#allocation5 + $0x98] sm:$0xff]
    %v734 = vld [vmem:[#allocation5 + $0xa0] sm:$0xff]
    %v735 = vld [vmem:[#allocation5 + $0xa8] sm:$0xff]
    %v736 = vld [vmem:[#allocation5 + $0xb0] sm:$0xff]
    %v737 = vld [vmem:[#allocation5 + $0xb8] sm:$0xff]
    %v738 = vld [vmem:[#allocation5 + $0xc0] sm:$0xff]
    %v739 = vld [vmem:[#allocation5 + $0xc8] sm:$0xff]
    %v740 = vld [vmem:[#allocation5 + $0xd0] sm:$0xff]
    %v741 = vld [vmem:[#allocation5 + $0xd8] sm:$0xff]
    %v742 = vld [vmem:[#allocation5 + $0xe0] sm:$0xff]
    %v743 = vld [vmem:[#allocation5 + $0xe8] sm:$0xff]
    %v744 = vld [vmem:[#allocation5 + $0xf0] sm:$0xff]
    %v745 = vld [vmem:[#allocation5 + $0xf8] sm:$0xff]
    %v746 = vld [vmem:[#allocation5 + $0x100] sm:$0xff]
    %v747 = vld [vmem:[#allocation5 + $0x108] sm:$0xff]
    %v748 = vld [vmem:[#allocation5 + $0x110] sm:$0xff]
    %v749 = vld [vmem:[#allocation5 + $0x118] sm:$0xff]
    %v750 = vld [vmem:[#allocation5 + $0x120] sm:$0xff]
    %v751 = vld [vmem:[#allocation5 + $0x128] sm:$0xff]
    %v752 = vld [vmem:[#allocation5 + $0x130] sm:$0xff]
    %v753 = vld [vmem:[#allocation5 + $0x138] sm:$0xff]
    %v754 = vld [vmem:[#allocation5 + $0x140] sm:$0xff]
    %v755 = vld [vmem:[#allocation5 + $0x148] sm:$0xff]
    %v756 = vld [vmem:[#allocation5 + $0x150] sm:$0xff]
    %v757 = vld [vmem:[#allocation5 + $0x158] sm:$0xff]
    %v758 = vld [vmem:[#allocation5 + $0x160] sm:$0xff]
    %v759 = vld [vmem:[#allocation5 + $0x168] sm:$0xff]
    %v760 = vld [vmem:[#allocation5 + $0x170] sm:$0xff]
    %v761 = vld [vmem:[#allocation5 + $0x178] sm:$0xff]
    %v762 = vld [vmem:[#allocation5 + $0x180] sm:$0xff]
    %v763 = vld [vmem:[#allocation5 + $0x188] sm:$0xff]
    %v764 = vld [vmem:[#allocation5 + $0x190] sm:$0xff]
    %v765 = vld [vmem:[#allocation5 + $0x198] sm:$0xff]
    %v766 = vld [vmem:[#allocation5 + $0x1a0] sm:$0xff]
    %v767 = vld [vmem:[#allocation5 + $0x1a8] sm:$0xff]
    %v768 = vld [vmem:[#allocation5 + $0x1b0] sm:$0xff]
    %v769 = vld [vmem:[#allocation5 + $0x1b8] sm:$0xff]
    %v770 = vld [vmem:[#allocation5 + $0x1c0] sm:$0xff]
    %v771 = vld [vmem:[#allocation5 + $0x1c8] sm:$0xff]
    %v772 = vld [vmem:[#allocation5 + $0x1d0] sm:$0xff]
    %v773 = vld [vmem:[#allocation5 + $0x1d8] sm:$0xff]
    %v774 = vld [vmem:[#allocation5 + $0x1e0] sm:$0xff]
    %v775 = vld [vmem:[#allocation5 + $0x1e8] sm:$0xff]
    %v776 = vld [vmem:[#allocation5 + $0x1f0] sm:$0xff]
    %v777 = vld [vmem:[#allocation5 + $0x1f8] sm:$0xff]
    %v778 = vld [vmem:[%s6] sm:$0x3]
    %v780 = vlaneseq
    %v781 = vshrl.u32 %v780, 7
    %v782 = vsub.s32 0, %v781
    %v783 = vrot.slane %v778, %v782
    %v784 = vlaneseq
    %v785 = vshrl.u32 %v784, 7
    %v786 = vsub.s32 1, %v785
    %v787 = vrot.slane %v778, %v786
    %790 = vmatprep.subr.mxu0 %v745
    %791 = vmatpush1.msra.mxu0 %v744
    %792 = vmatprep.subr.mxu0 %v743
    %793 = vmatpush1.msra.mxu0 %v742
    %794 = vmatprep.subr.mxu0 %v741
    %795 = vmatpush1.msra.mxu0 %v740
    %796 = vmatprep.subr.mxu0 %v739
    %797 = vmatpush1.msra.mxu0 %v738
    %798 = vmatprep.subr.mxu0 %v737
    %799 = vmatpush1.msra.mxu0 %v736
    %800 = vmatprep.subr.mxu0 %v735
    %801 = vmatpush1.msra.mxu0 %v734
    %802 = vmatprep.subr.mxu0 %v733
    %803 = vmatpush1.msra.mxu0 %v732
    %804 = vmatprep.subr.mxu0 %v731
    %805 = vmatpush1.msra.mxu0 %v730
    %806 = vmatprep.subr.mxu0 %v729
    %807 = vmatpush1.msra.mxu0 %v728
    %808 = vmatprep.subr.mxu0 %v727
    %809 = vmatpush1.msra.mxu0 %v726
    %810 = vmatprep.subr.mxu0 %v725
    %811 = vmatpush1.msra.mxu0 %v724
    %812 = vmatprep.subr.mxu0 %v723
    %813 = vmatpush1.msra.mxu0 %v722
    %814 = vmatprep.subr.mxu0 %v721
    %815 = vmatpush1.msra.mxu0 %v720
    %816 = vmatprep.subr.mxu0 %v719
    %817 = vmatpush1.msra.mxu0 %v718
    %818 = vmatprep.subr.mxu0 %v717
    %819 = vmatpush1.msra.mxu0 %v716
    %820 = vmatprep.subr.mxu0 %v715
    %821 = vmatpush1.msra.mxu0 %v714
    %822 = vmatprep.subr.mxu0 %v777
    %823 = vmatpush2.msra.mxu0 %v776
    %824 = vmatprep.subr.mxu0 %v775
    %825 = vmatpush2.msra.mxu0 %v774
    %826 = vmatprep.subr.mxu0 %v773
    %827 = vmatpush2.msra.mxu0 %v772
    %828 = vmatprep.subr.mxu0 %v771
    %829 = vmatpush2.msra.mxu0 %v770
    %830 = vmatprep.subr.mxu0 %v769
    %831 = vmatpush2.msra.mxu0 %v768
    %832 = vmatprep.subr.mxu0 %v767
    %833 = vmatpush2.msra.mxu0 %v766
    %834 = vmatprep.subr.mxu0 %v765
    %835 = vmatpush2.msra.mxu0 %v764
    %836 = vmatprep.subr.mxu0 %v763
    %837 = vmatpush2.msra.mxu0 %v762
    %838 = vmatprep.subr.mxu0 %v761
    %839 = vmatpush2.msra.mxu0 %v760
    %840 = vmatprep.subr.mxu0 %v759
    %841 = vmatpush2.msra.mxu0 %v758
    %842 = vmatprep.subr.mxu0 %v757
    %843 = vmatpush2.msra.mxu0 %v756
    %844 = vmatprep.subr.mxu0 %v755
    %845 = vmatpush2.msra.mxu0 %v754
    %846 = vmatprep.subr.mxu0 %v753
    %847 = vmatpush2.msra.mxu0 %v752
    %848 = vmatprep.subr.mxu0 %v751
    %849 = vmatpush2.msra.mxu0 %v750
    %850 = vmatprep.subr.mxu0 %v749
    %851 = vmatpush2.msra.mxu0 %v748
    %852 = vmatprep.subr.mxu0 %v747
    %853 = vmatpush2.msra.mxu0 %v746
    %854 = vmatprep.mubr.f32.mxu0 %v697
    %855 = vmatmul.mubr.f32.gmra.mxu0 %v696
    %v856 = vpop.f32.mrf.mxu0
    %v857 = vadd.f32 %v783, %v856
    %v858 = vpop.f32.mrf.mxu0
    %v859 = vadd.f32 %v787, %v858
    %860 = vmatprep.mubr.f32.mxu0 %v699
    %861 = vmatmul.mubr.f32.gmra.mxu0 %v698
    %v862 = vpop.f32.mrf.mxu0
    %v863 = vadd.f32 %v783, %v862
    %v864 = vpop.f32.mrf.mxu0
    %v865 = vadd.f32 %v787, %v864
    %866 = vmatprep.mubr.f32.mxu0 %v701
    %867 = vmatmul.mubr.f32.gmra.mxu0 %v700
    %v868 = vpop.f32.mrf.mxu0
    %v869 = vadd.f32 %v783, %v868
    %v870 = vpop.f32.mrf.mxu0
    %v871 = vadd.f32 %v787, %v870
    %872 = vmatprep.mubr.f32.mxu0 %v703
    %873 = vmatmul.mubr.f32.gmra.mxu0 %v702
    %v874 = vpop.f32.mrf.mxu0
    %v875 = vadd.f32 %v783, %v874
    %v876 = vpop.f32.mrf.mxu0
    %v877 = vadd.f32 %v787, %v876
    %878 = vmatprep.mubr.f32.mxu0 %v705
    %879 = vmatmul.mubr.f32.gmra.mxu0 %v704
    %v880 = vpop.f32.mrf.mxu0
    %v881 = vadd.f32 %v783, %v880
    %v882 = vpop.f32.mrf.mxu0
    %v883 = vadd.f32 %v787, %v882
    %884 = vmatprep.mubr.f32.mxu0 %v707
    %885 = vmatmul.mubr.f32.gmra.mxu0 %v706
    %v886 = vpop.f32.mrf.mxu0
    %v887 = vadd.f32 %v783, %v886
    %v888 = vpop.f32.mrf.mxu0
    %v889 = vadd.f32 %v787, %v888
    %890 = vmatprep.mubr.f32.mxu0 %v709
    %891 = vmatmul.mubr.f32.gmra.mxu0 %v708
    %v892 = vpop.f32.mrf.mxu0
    %v893 = vadd.f32 %v783, %v892
    %v894 = vpop.f32.mrf.mxu0
    %v895 = vadd.f32 %v787, %v894
    %896 = vmatprep.mubr.f32.mxu0 %v711
    %897 = vmatmul.mubr.f32.gmra.mxu0 %v710
    %v898 = vpop.f32.mrf.mxu0
    %v899 = vadd.f32 %v783, %v898
    %v900 = vpop.f32.mrf.mxu0
    %v901 = vadd.f32 %v787, %v900
    %902 = vdwg.mxu0
    %v903 = vmax.f32 %v857, 0.0
    %v904 = vmax.f32 %v859, 0.0
    %v905 = vmax.f32 %v863, 0.0
    %v906 = vmax.f32 %v865, 0.0
    %v907 = vmax.f32 %v869, 0.0
    %v908 = vmax.f32 %v871, 0.0
    %v909 = vmax.f32 %v875, 0.0
    %v910 = vmax.f32 %v877, 0.0
    %v911 = vmax.f32 %v881, 0.0
    %v912 = vmax.f32 %v883, 0.0
    %v913 = vmax.f32 %v887, 0.0
    %v914 = vmax.f32 %v889, 0.0
    %v915 = vmax.f32 %v893, 0.0
    %v916 = vmax.f32 %v895, 0.0
    %v917 = vmax.f32 %v899, 0.0
    %v918 = vmax.f32 %v901, 0.0
    %919 = vst [vmem:[#allocation12] sm:$0xff] %v903
    %920 = vst [vmem:[#allocation12 + $0x8] sm:$0xff] %v904
    %921 = vst [vmem:[#allocation12 + $0x10] sm:$0xff] %v905
    %922 = vst [vmem:[#allocation12 + $0x18] sm:$0xff] %v906
    %923 = vst [vmem:[#allocation12 + $0x20] sm:$0xff] %v907
    %924 = vst [vmem:[#allocation12 + $0x28] sm:$0xff] %v908
    %925 = vst [vmem:[#allocation12 + $0x30] sm:$0xff] %v909
    %926 = vst [vmem:[#allocation12 + $0x38] sm:$0xff] %v910
    %927 = vst [vmem:[#allocation12 + $0x40] sm:$0xff] %v911
    %928 = vst [vmem:[#allocation12 + $0x48] sm:$0xff] %v912
    %929 = vst [vmem:[#allocation12 + $0x50] sm:$0xff] %v913
    %930 = vst [vmem:[#allocation12 + $0x58] sm:$0xff] %v914
    %931 = vst [vmem:[#allocation12 + $0x60] sm:$0xff] %v915
    %932 = vst [vmem:[#allocation12 + $0x68] sm:$0xff] %v916
    %933 = vst [vmem:[#allocation12 + $0x70] sm:$0xff] %v917
    %934 = vst [vmem:[#allocation12 + $0x78] sm:$0xff] %v918
    // Predicated region
    $region42: #{tpu_custom_call.1} parent=1 // pred_check
      _
    $region43: #{tpu_custom_call.1} parent=1 // pred_check_branch
      %936 = sbr.rel (0) target = $region45
    $region44: #{tpu_custom_call.1} parent=1 // pred_region
      %s938 = ssub.s32 2048, 2048
      %939 = vsyncadd [#allocation9], %s938
      %s940 = sshll.u32 [#allocation12], 4
      %s941 = int_to_ptr.vmem [resolvable:$true] %s940
      %946 = dma.vmem_to_hbm [thread:$0]  %s941, 2048, %s8, [#allocation9], 256, 256, 16
    $region45: #{tpu_custom_call.1} parent=1 // pred_fallthru
      _
    // Predicated region
    $region46: #{tpu_custom_call.1} parent=1 // pred_check
      _
    $region47: #{tpu_custom_call.1} parent=1 // pred_check_branch
      %948 = sbr.rel (0) target = $region49
    $region48: #{tpu_custom_call.1} parent=1 // pred_region
      %949 = dma.done [#allocation9], 2048
    $region49: #{tpu_custom_call.1} parent=1 // pred_fallthru
      _
    %950 = vsyncpa [#allocation8], 1
    %951 = vsyncpa [#allocation11], 1
    %952 = vsyncpa [#allocation9], 1
  %953 = vsyncmov [#allocation6]
  %s954 = vpop.sfrf %953
  %p955 = scmp.eq.s32.totalorder %s954, 0
  %p956 = pneg %p955
  %958 = shalt.err (%p956)
  %s959 = scalar_lea.sflag [#allocation6], 1
  %960 = vsyncmov %s959
  %s961 = vpop.sfrf %960
  %p962 = scmp.eq.s32.totalorder %s961, 0
  %p963 = pneg %p962
  %965 = shalt.err (%p963)
  %s966 = scalar_lea.sflag [#allocation6], 2
  %967 = vsyncmov %s966
  %s968 = vpop.sfrf %967
  %p969 = scmp.eq.s32.totalorder %s968, 0
  %p970 = pneg %p969
  %972 = shalt.err (%p970)
  %s973 = scalar_lea.sflag [#allocation6], 3
  %974 = vsyncmov %s973
  %s975 = vpop.sfrf %974
  %p976 = scmp.eq.s32.totalorder %s975, 0
  %p977 = pneg %p976
  %979 = shalt.err (%p977)

</llo_original>
